<compile_context>
chip_gen: v7x
topology: tpu7x:2x2x1
jax: 0.10.0
libtpu: 0.0.40
codegen_flags: <defaults>
</compile_context>

<pallas_src>
import functools

import jax
import jax.numpy as jnp
from jax import lax
from jax.experimental import pallas as pl
from jax.experimental.pallas import tpu as pltpu

_NEG_BIG = -1e30  # bias pad value for padded classes: kills their softmax weight


def _round_up(a: int, b: int) -> int:
    return (a + b - 1) // b * b


def softmax_loss_kernel(x_ref, w_ref, b_ref, y_ref, out_ref,
                        m_sc, l_sc, tgt_sc, *, matmul_dtype):
    j = pl.program_id(1)

    @pl.when(j == 0)
    def _init():
        m_sc[...] = jnp.full(m_sc.shape, -jnp.inf, dtype=jnp.float32)
        l_sc[...] = jnp.zeros(l_sc.shape, dtype=jnp.float32)
        tgt_sc[...] = jnp.zeros(tgt_sc.shape, dtype=jnp.float32)

    # Linear head on the MXU: logits = x @ W^T + b. Contract the embedding axis
    # directly against the (TC, E) weight tile — no transpose anywhere. bf16
    # inputs hit the fast MXU path; accumulation stays f32.
    x = x_ref[...].astype(matmul_dtype)
    w = w_ref[...].astype(matmul_dtype)
    logits = lax.dot_general(
        x, w, dimension_numbers=(((1,), (1,)), ((), ())),
        preferred_element_type=jnp.float32)
    logits = logits + b_ref[...]                                   # (TB, TC) f32

    # Target-class logit for this C-tile (dynamic-index-free gather): compare the
    # GLOBAL class id (offset by j*TC) against the label and accumulate.
    tc = logits.shape[1]
    col = lax.broadcasted_iota(jnp.int32, logits.shape, 1) + j * tc
    hit = col == y_ref[...]                                        # (TB, TC)
    tgt_sc[...] += jnp.sum(jnp.where(hit, logits, 0.0), axis=-1, keepdims=True)

    # Online (running) logsumexp, all in f32.
    m_prev = m_sc[...]
    m_new = jnp.maximum(m_prev, jnp.max(logits, axis=-1, keepdims=True))
    p = jnp.exp(logits - m_new)
    l_sc[...] = l_sc[...] * jnp.exp(m_prev - m_new) + jnp.sum(p, axis=-1, keepdims=True)
    m_sc[...] = m_new

    @pl.when(j == pl.num_programs(1) - 1)
    def _finalize():
        lse = m_sc[...] + jnp.log(l_sc[...])
        out_ref[...] = lse - tgt_sc[...]                           # per-sample NLL


def softmax_loss(x, y, weight, bias, *, tb=None, tc=None,
                 matmul_dtype=jnp.bfloat16,
                 vmem_budget_bytes=40 * 1024 * 1024):
    """Mean cross-entropy of a dense classification head.

    x: (B, E) f32, y: (B,) int, weight: (C, E) f32, bias: (C,) f32 -> scalar f32.
    """
    B, E = x.shape
    C, E_w = weight.shape
    assert E == E_w, (E, E_w)

    # --- tile selection: lane/MXU aligned, shrunk to fit a v7x-safe VMEM budget ---
    e_pad = _round_up(E, 128)
    tb = tb if tb is not None else min(128, _round_up(B, 8))
    tc = tc if tc is not None else min(512, _round_up(C, 128))

    def vmem_estimate(tb_, tc_):
        dbl_inputs = 2 * 4 * (tb_ * e_pad + tc_ * e_pad + tc_ + tb_)  # double-buffered f32
        out_and_scratch = 4 * (2 * tb_ + 3 * tb_)
        working_set = 4 * 4 * tb_ * tc_                               # logits + temporaries
        return dbl_inputs + out_and_scratch + working_set

    while vmem_estimate(tb, tc) > vmem_budget_bytes and tc > 128:
        tc //= 2
    while vmem_estimate(tb, tc) > vmem_budget_bytes and tb > 8:
        tb //= 2

    b_pad = _round_up(B, tb)
    c_pad = _round_up(C, tc)

    # --- pad to tile multiples (zeros for x / W / E axis, big-negative bias for
    #     padded classes so they contribute nothing to the logsumexp) ---
    xp = jnp.pad(x.astype(jnp.float32), ((0, b_pad - B), (0, e_pad - E)))
    wp = jnp.pad(weight.astype(jnp.float32), ((0, c_pad - C), (0, e_pad - E)))
    bp = jnp.pad(bias.astype(jnp.float32), ((0, c_pad - C),),
                 constant_values=_NEG_BIG).reshape(1, c_pad)
    yp = jnp.pad(y.astype(jnp.int32), ((0, b_pad - B),)).reshape(b_pad, 1)

    grid = (b_pad // tb, c_pad // tc)

    per_sample = pl.pallas_call(
        functools.partial(softmax_loss_kernel, matmul_dtype=matmul_dtype),
        out_shape=jax.ShapeDtypeStruct((b_pad, 1), jnp.float32),
        grid_spec=pltpu.PrefetchScalarGridSpec(
            num_scalar_prefetch=0,
            grid=grid,
            in_specs=[
                pl.BlockSpec((tb, e_pad), lambda i, j: (i, 0)),    # x tile (resident over j)
                pl.BlockSpec((tc, e_pad), lambda i, j: (j, 0)),    # weight tile, (C, E) layout
                pl.BlockSpec((1, tc), lambda i, j: (0, j)),        # bias tile
                pl.BlockSpec((tb, 1), lambda i, j: (i, 0)),        # labels (resident over j)
            ],
            out_specs=pl.BlockSpec((tb, 1), lambda i, j: (i, 0)),  # per-sample NLL
            scratch_shapes=[pltpu.VMEM((tb, 1), jnp.float32)] * 3, # m, l, tgt accumulators
        ),
        compiler_params=pltpu.CompilerParams(
            dimension_semantics=("parallel", "arbitrary"),
            vmem_limit_bytes=int(min(56 * 1024 * 1024,
                                     max(8 * 1024 * 1024, 2 * vmem_estimate(tb, tc)))),
        ),
    )(xp, wp, bp, yp)

    # Global-B mean (never the per-block size); padded rows are dropped.
    # TODO(synk): nn.CrossEntropyLoss ignore_index=-100 semantics not implemented;
    # labels are assumed to be valid class ids as in the training objective.
    return jnp.sum(per_sample[:B, 0]) / jnp.float32(B)


if __name__ == "__main__":
    # Small shapes, but chosen (with forced small tiles) so the grid is (2, 2) and
    # the online logsumexp across class tiles is actually exercised.
    B, E, C = 16, 64, 256

    key = jax.random.PRNGKey(0)
    kx, kw, kb, ky = jax.random.split(key, 4)

    x = jax.random.normal(kx, (B, E), dtype=jnp.float32)
    y = jax.random.randint(ky, (B,), 0, C, dtype=jnp.int32)

    bound = 1.0 / (E ** 0.5)  # nn.Linear default init range
    weight = jax.random.uniform(kw, (C, E), minval=-bound, maxval=bound, dtype=jnp.float32)
    bias = jax.random.uniform(kb, (C,), minval=-bound, maxval=bound, dtype=jnp.float32)

    loss = softmax_loss(x, y, weight, bias, tb=8, tc=128)
    jax.block_until_ready(loss)

    # References: exact-math f32 and a bf16-matmul reference matching the kernel's MXU path.
    logits_f32 = x @ weight.T + bias
    ref_f32 = jnp.mean(
        jax.nn.logsumexp(logits_f32, axis=-1) - logits_f32[jnp.arange(B), y])

    logits_bf16 = jnp.dot(x.astype(jnp.bfloat16), weight.astype(jnp.bfloat16).T,
                          preferred_element_type=jnp.float32) + bias
    ref_bf16 = jnp.mean(
        jax.nn.logsumexp(logits_bf16, axis=-1) - logits_bf16[jnp.arange(B), y])

    assert jnp.allclose(loss, ref_bf16, atol=1e-4, rtol=1e-4), (loss, ref_bf16)
    assert jnp.allclose(loss, ref_f32, atol=5e-2, rtol=5e-2), (loss, ref_f32)

    print("KERNEL_OK")
</pallas_src>

<mosaic_0001>
module attributes {stable_mosaic.version = 11 : i64} {
  func.func @softmax_loss_kernel(%arg0: i32, %arg1: i32, %arg2: memref<8x128xf32, #tpu.memory_space<vmem>>, %arg3: memref<128x128xf32, #tpu.memory_space<vmem>>, %arg4: memref<1x128xf32, #tpu.memory_space<vmem>>, %arg5: memref<8x1xi32, #tpu.memory_space<vmem>>, %arg6: memref<8x1xf32, #tpu.memory_space<vmem>>, %arg7: memref<8x1xf32, #tpu.memory_space<vmem>>, %arg8: memref<8x1xf32, #tpu.memory_space<vmem>>, %arg9: memref<8x1xf32, #tpu.memory_space<vmem>>) attributes {dimension_semantics = [#tpu.dimension_semantics<parallel>, #tpu.dimension_semantics<arbitrary>], iteration_bounds = array<i64: 2, 2>, scalar_prefetch = 0 : i64, scratch_operands = 3 : i64, tpu.core_type = #tpu.core_type<tc>, window_params = [{transform_indices = @transform_0, window_bounds = array<i64: 8, 128>}, {transform_indices = @transform_1, window_bounds = array<i64: 128, 128>}, {transform_indices = @transform_2, window_bounds = array<i64: 1, 128>}, {transform_indices = @transform_3, window_bounds = array<i64: 8, 1>}, {transform_indices = @transform_4, window_bounds = array<i64: 8, 1>}]} {
    %c0_i32 = arith.constant 0 : i32
    %0 = arith.cmpi eq, %arg1, %c0_i32 : i32
    %1 = arith.extui %0 : i1 to i32
    %c0_i32_0 = arith.constant 0 : i32
    %2 = arith.cmpi ne, %1, %c0_i32_0 : i32
    scf.if %2 {
      %cst_25 = arith.constant 0xFF800000 : f32
      %44 = vector.broadcast %cst_25 : f32 to vector<8x1xf32>
      %c0_26 = arith.constant 0 : index
      %c0_27 = arith.constant 0 : index
      %45 = vector.load %arg7[%c0_26, %c0_27] : memref<8x1xf32, #tpu.memory_space<vmem>>, vector<8x1xf32>
      tpu.vector_store %arg7[%c0_26, %c0_27], %44 {strides = array<i32>} : memref<8x1xf32, #tpu.memory_space<vmem>>, vector<8x1xf32>,
      %cst_28 = arith.constant 0.000000e+00 : f32
      %46 = vector.broadcast %cst_28 : f32 to vector<8x1xf32>
      %c0_29 = arith.constant 0 : index
      %c0_30 = arith.constant 0 : index
      %47 = vector.load %arg8[%c0_29, %c0_30] : memref<8x1xf32, #tpu.memory_space<vmem>>, vector<8x1xf32>
      tpu.vector_store %arg8[%c0_29, %c0_30], %46 {strides = array<i32>} : memref<8x1xf32, #tpu.memory_space<vmem>>, vector<8x1xf32>,
      %cst_31 = arith.constant 0.000000e+00 : f32
      %48 = vector.broadcast %cst_31 : f32 to vector<8x1xf32>
      %c0_32 = arith.constant 0 : index
      %c0_33 = arith.constant 0 : index
      %49 = vector.load %arg9[%c0_32, %c0_33] : memref<8x1xf32, #tpu.memory_space<vmem>>, vector<8x1xf32>
      tpu.vector_store %arg9[%c0_32, %c0_33], %48 {strides = array<i32>} : memref<8x1xf32, #tpu.memory_space<vmem>>, vector<8x1xf32>,
    } else {
    }
    %c0 = arith.constant 0 : index
    %c0_1 = arith.constant 0 : index
    %3 = vector.load %arg2[%c0, %c0_1] : memref<8x128xf32, #tpu.memory_space<vmem>>, vector<8x128xf32>
    %4 = arith.truncf %3 : vector<8x128xf32> to vector<8x128xbf16>
    %c0_2 = arith.constant 0 : index
    %c0_3 = arith.constant 0 : index
    %5 = vector.load %arg3[%c0_2, %c0_3] : memref<128x128xf32, #tpu.memory_space<vmem>>, vector<128x128xf32>
    %6 = arith.truncf %5 : vector<128x128xf32> to vector<128x128xbf16>
    %cst = arith.constant dense<0.000000e+00> : vector<8x128xf32>
    %7 = tpu.matmul %4, %6, %cst {dimension_numbers = #tpu.dot_dimension_numbers<[1], [1], [0], [0], [0, 0, 1, 0], [], []>} : vector<8x128xbf16>, vector<128x128xbf16>, vector<8x128xf32> -> vector<8x128xf32>
    %c0_4 = arith.constant 0 : index
    %c0_5 = arith.constant 0 : index
    %8 = vector.load %arg4[%c0_4, %c0_5] : memref<1x128xf32, #tpu.memory_space<vmem>>, vector<1x128xf32>
    %9 = vector.broadcast %8 : vector<1x128xf32> to vector<8x128xf32>
    %10 = arith.addf %7, %9 : vector<8x128xf32>
    %11 = tpu.iota {dimensions = array<i32: 1>} : vector<8x128xi32>
    %c128_i32 = arith.constant 128 : i32
    %12 = arith.muli %arg1, %c128_i32 : i32
    %13 = vector.broadcast %12 : i32 to vector<8x128xi32>
    %14 = arith.addi %11, %13 : vector<8x128xi32>
    %c0_6 = arith.constant 0 : index
    %c0_7 = arith.constant 0 : index
    %15 = vector.load %arg5[%c0_6, %c0_7] : memref<8x1xi32, #tpu.memory_space<vmem>>, vector<8x1xi32>
    %16 = vector.broadcast %15 : vector<8x1xi32> to vector<8x128xi32>
    %17 = arith.cmpi eq, %14, %16 : vector<8x128xi32>
    %c0_8 = arith.constant 0 : index
    %c0_9 = arith.constant 0 : index
    %18 = vector.load %arg9[%c0_8, %c0_9] : memref<8x1xf32, #tpu.memory_space<vmem>>, vector<8x1xf32>
    %cst_10 = arith.constant 0.000000e+00 : f32
    %19 = vector.broadcast %cst_10 : f32 to vector<8x128xf32>
    %20 = arith.select %17, %10, %19 : vector<8x128xi1>, vector<8x128xf32>
    %cst_11 = arith.constant dense<0.000000e+00> : vector<8xf32>
    %21 = vector.multi_reduction <add>, %20, %cst_11 [1] : vector<8x128xf32> to vector<8xf32>
    %22 = vector.shape_cast %21 : vector<8xf32> to vector<8x1xf32>
    %23 = arith.addf %18, %22 : vector<8x1xf32>
    %c0_12 = arith.constant 0 : index
    %c0_13 = arith.constant 0 : index
    %24 = vector.load %arg9[%c0_12, %c0_13] : memref<8x1xf32, #tpu.memory_space<vmem>>, vector<8x1xf32>
    tpu.vector_store %arg9[%c0_12, %c0_13], %23 {strides = array<i32>} : memref<8x1xf32, #tpu.memory_space<vmem>>, vector<8x1xf32>,
    %c0_14 = arith.constant 0 : index
    %c0_15 = arith.constant 0 : index
    %25 = vector.load %arg7[%c0_14, %c0_15] : memref<8x1xf32, #tpu.memory_space<vmem>>, vector<8x1xf32>
    %cst_16 = arith.constant dense<0xFF800000> : vector<8xf32>
    %26 = vector.multi_reduction <maximumf>, %10, %cst_16 [1] : vector<8x128xf32> to vector<8xf32>
    %27 = vector.shape_cast %26 : vector<8xf32> to vector<8x1xf32>
    %28 = arith.maximumf %25, %27 : vector<8x1xf32>
    %29 = vector.broadcast %28 : vector<8x1xf32> to vector<8x128xf32>
    %30 = arith.subf %10, %29 : vector<8x128xf32>
    %31 = math.exp %30 : vector<8x128xf32>
    %c0_17 = arith.constant 0 : index
    %c0_18 = arith.constant 0 : index
    %32 = vector.load %arg8[%c0_17, %c0_18] : memref<8x1xf32, #tpu.memory_space<vmem>>, vector<8x1xf32>
    %33 = arith.subf %25, %28 : vector<8x1xf32>
    %34 = math.exp %33 : vector<8x1xf32>
    %35 = arith.mulf %32, %34 : vector<8x1xf32>
    %cst_19 = arith.constant dense<0.000000e+00> : vector<8xf32>
    %36 = vector.multi_reduction <add>, %31, %cst_19 [1] : vector<8x128xf32> to vector<8xf32>
    %37 = vector.shape_cast %36 : vector<8xf32> to vector<8x1xf32>
    %38 = arith.addf %35, %37 : vector<8x1xf32>
    %c0_20 = arith.constant 0 : index
    %c0_21 = arith.constant 0 : index
    %39 = vector.load %arg8[%c0_20, %c0_21] : memref<8x1xf32, #tpu.memory_space<vmem>>, vector<8x1xf32>
    tpu.vector_store %arg8[%c0_20, %c0_21], %38 {strides = array<i32>} : memref<8x1xf32, #tpu.memory_space<vmem>>, vector<8x1xf32>,
    %c0_22 = arith.constant 0 : index
    %c0_23 = arith.constant 0 : index
    %40 = vector.load %arg7[%c0_22, %c0_23] : memref<8x1xf32, #tpu.memory_space<vmem>>, vector<8x1xf32>
    tpu.vector_store %arg7[%c0_22, %c0_23], %28 {strides = array<i32>} : memref<8x1xf32, #tpu.memory_space<vmem>>, vector<8x1xf32>,
    %c1_i32 = arith.constant 1 : i32
    %41 = arith.cmpi eq, %arg1, %c1_i32 : i32
    %42 = arith.extui %41 : i1 to i32
    %c0_i32_24 = arith.constant 0 : i32
    %43 = arith.cmpi ne, %42, %c0_i32_24 : i32
    scf.if %43 {
      %c0_25 = arith.constant 0 : index
      %c0_26 = arith.constant 0 : index
      %44 = vector.load %arg7[%c0_25, %c0_26] : memref<8x1xf32, #tpu.memory_space<vmem>>, vector<8x1xf32>
      %c0_27 = arith.constant 0 : index
      %c0_28 = arith.constant 0 : index
      %45 = vector.load %arg8[%c0_27, %c0_28] : memref<8x1xf32, #tpu.memory_space<vmem>>, vector<8x1xf32>
      %46 = math.log %45 : vector<8x1xf32>
      %47 = arith.addf %44, %46 : vector<8x1xf32>
      %c0_29 = arith.constant 0 : index
      %c0_30 = arith.constant 0 : index
      %48 = vector.load %arg9[%c0_29, %c0_30] : memref<8x1xf32, #tpu.memory_space<vmem>>, vector<8x1xf32>
      %49 = arith.subf %47, %48 : vector<8x1xf32>
      %c0_31 = arith.constant 0 : index
      %c0_32 = arith.constant 0 : index
      %50 = vector.load %arg6[%c0_31, %c0_32] : memref<8x1xf32, #tpu.memory_space<vmem>>, vector<8x1xf32>
      tpu.vector_store %arg6[%c0_31, %c0_32], %49 {strides = array<i32>} : memref<8x1xf32, #tpu.memory_space<vmem>>, vector<8x1xf32>,
    } else {
    }
    return
  }
  func.func @transform_0(%arg0: i32, %arg1: i32) -> (i32, i32) {
    %c0_i32 = arith.constant 0 : i32
    %c0_i32_0 = arith.constant 0 : i32
    return %arg0, %c0_i32 : i32, i32
  }
  func.func @transform_1(%arg0: i32, %arg1: i32) -> (i32, i32) {
    %c0_i32 = arith.constant 0 : i32
    %c0_i32_0 = arith.constant 0 : i32
    return %arg1, %c0_i32 : i32, i32
  }
  func.func @transform_2(%arg0: i32, %arg1: i32) -> (i32, i32) {
    %c0_i32 = arith.constant 0 : i32
    %c0_i32_0 = arith.constant 0 : i32
    return %c0_i32, %arg1 : i32, i32
  }
  func.func @transform_3(%arg0: i32, %arg1: i32) -> (i32, i32) {
    %c0_i32 = arith.constant 0 : i32
    %c0_i32_0 = arith.constant 0 : i32
    return %arg0, %c0_i32 : i32, i32
  }
  func.func @transform_4(%arg0: i32, %arg1: i32) -> (i32, i32) {
    %c0_i32 = arith.constant 0 : i32
    %c0_i32_0 = arith.constant 0 : i32
    return %arg0, %c0_i32 : i32, i32
  }
}

</mosaic_0001>

<llo_original>
// kernel: tpu_custom_call.1
$region0: #{tpu_custom_call.1}
  #allocation0 [shape = 'u32[]', space=smem, size = 0x4, offset = 0x4, fixed_abs, tag = 'smem constant byte address 0x4 - core index']
  #allocation1 [shape = 'u32[144,128]{1,0:T(1,128)}', space=vmem, size = 0x12000, scoped, tag = 'internal scratch']
  #allocation2 [shape = 'f32[8,1]{1,0:T(8,128)}', space=vmem, size = 0x1000, scoped, tag = 'scratch operand']
  #allocation3 [shape = 'f32[8,1]{1,0:T(8,128)}', space=vmem, size = 0x1000, scoped, tag = 'scratch operand']
  #allocation4 [shape = 'f32[8,1]{1,0:T(8,128)}', space=vmem, size = 0x1000, scoped, tag = 'scratch operand']
  %s0 = inlined_call_operand.vmem [shape: f32[16,128], index: 0, kind: input, shape index: {}]
  %s1 = inlined_call_operand.hbm [shape: f32[256,128], index: 1, kind: input, shape index: {}]
  %s2 = inlined_call_operand.vmem [shape: f32[1,256], index: 2, kind: input, shape index: {}]
  %s3 = inlined_call_operand.vmem [shape: s32[16,1], index: 3, kind: input, shape index: {}]
  %s4 = inlined_call_operand.vmem [shape: f32[16,1], index: 4, kind: output, shape index: {}]
  %s5 = sld [smem:[#allocation0]]
  $region61: #{tpu_custom_call.1} parent=0
    _
  %s7 = ssub.s32 1, %s5
  %s8 = scalar_select 0, %s7, %s5
  $region1: #{tpu_custom_call.1} parent=0
    #allocation5 [shape = 'u8[131072]{0}', space=vmem, size = 0x20000, scoped, tag = 'input window, operand 1']
    #allocation6 [shape = 's32[2]{0}', space=sflag, size = 0x8, scoped, tag = 'scoped memory for tpu_custom_call.1']
    %9 = vsyncpa [#allocation6], 0
    %s10 = scalar_lea.sflag [#allocation6], 1
    %11 = vsyncpa %s10, 0
    loop: start=0, step=1, limit=6
    $region2: #{tpu_custom_call.1} parent=1 // loop_pre_header
      _
    $region3: #{tpu_custom_call.1} parent=1 // loop_header
      %s13 = sphi 0, %s17
      %p14 = scmp.ge.s32.totalorder %s13, 6
      %s20 = sphi 0, %s32
      %s21 = sphi 0, %s28
      %s22 = sphi 0, %s20
      %s23 = sphi 0, %s21
      %s24 = sphi 0, %s22
      %s25 = sphi 0, %s23
      %s35 = sphi 0, %s37
      %s38 = sphi 0, %s35
      %s39 = sphi 0, %s38
      %s55 = sphi 0, %s39
      %s61 = sphi 0, %s63
      %s64 = sphi 0, %s61
      %s65 = sphi 0, %s64
      %s81 = sphi 0, %s65
      %s87 = sphi 0, %s89
      %s90 = sphi 0, %s87
      %s91 = sphi 0, %s90
      %s107 = sphi 0, %s91
      %s113 = sphi 0, %s115
      %s116 = sphi 0, %s113
      %s117 = sphi 0, %s116
      %s133 = sphi 0, %s117
      %s139 = sphi 0, %s141
      %s142 = sphi 0, %s139
      %s143 = sphi 0, %s142
      %s159 = sphi 0, %s143
    $region4: #{tpu_custom_call.1} parent=1 // loop_header_branch
      %16 = sbr.rel (%p14) target = $region8
    $region5: #{tpu_custom_call.1} parent=1 // loop_body
      %s18 = ssub.s32 %s13, 1
      %s19 = ssub.s32 %s13, 2
      %s26 = sadd.s32 1, %s21
      %p27 = scmp.ge.s32.totalorder %s26, 2
      %s28 = scalar_select %p27, 0, %s26
      %s29 = sadd.s32 1, %s20
      %s30 = scalar_select %p27, %s29, %s20
      %p31 = scmp.ge.s32.totalorder %s30, 2
      %s32 = scalar_select %p31, 0, %s30
      %s33 = ssub.s32 %s20, %s32
      %p34 = scmp.eq.s32.totalorder %s33, 0
      %s36 = sadd.s32 %s35, 1
      %s37 = scalar_select %p34, %s35, %s36
      %p40 = pneg %p34
      %p41 = scmp.eq.s32.totalorder %s13, 3
      %p42 = por %p40, %p41
      %p43 = scmp.ne.s32.totalorder %s35, %s38
      %p44 = scmp.eq.s32.totalorder %s13, 0
      %p45 = por %p43, %p44
      %p46 = scmp.ne.s32.totalorder %s35, %s38
      %p47 = scmp.eq.s32.totalorder %s18, 3
      %p48 = por %p46, %p47
      %p49 = scmp.ne.s32.totalorder %s38, %s39
      %p50 = scmp.eq.s32.totalorder %s18, 0
      %p51 = por %p49, %p50
      %p52 = scmp.ne.s32.totalorder %s38, %s39
      %p53 = scmp.eq.s32.totalorder %s19, 3
      %p54 = por %p52, %p53
      %p56 = scmp.ne.s32.totalorder %s39, %s55
      %p57 = scmp.eq.s32.totalorder %s19, 0
      %p58 = por %p56, %p57
      %s59 = ssub.s32 %s21, %s28
      %p60 = scmp.eq.s32.totalorder %s59, 0
      %s62 = sadd.s32 %s61, 1
      %s63 = scalar_select %p60, %s61, %s62
      %p66 = pneg %p60
      %p67 = scmp.eq.s32.totalorder %s13, 3
      %p68 = por %p66, %p67
      %p69 = scmp.ne.s32.totalorder %s61, %s64
      %p70 = scmp.eq.s32.totalorder %s13, 0
      %p71 = por %p69, %p70
      %p72 = scmp.ne.s32.totalorder %s61, %s64
      %p73 = scmp.eq.s32.totalorder %s18, 3
      %p74 = por %p72, %p73
      %p75 = scmp.ne.s32.totalorder %s64, %s65
      %p76 = scmp.eq.s32.totalorder %s18, 0
      %p77 = por %p75, %p76
      %p78 = scmp.ne.s32.totalorder %s64, %s65
      %p79 = scmp.eq.s32.totalorder %s19, 3
      %p80 = por %p78, %p79
      %p82 = scmp.ne.s32.totalorder %s65, %s81
      %p83 = scmp.eq.s32.totalorder %s19, 0
      %p84 = por %p82, %p83
      %s85 = ssub.s32 %s21, %s28
      %p86 = scmp.eq.s32.totalorder %s85, 0
      %s88 = sadd.s32 %s87, 1
      %s89 = scalar_select %p86, %s87, %s88
      %p92 = pneg %p86
      %p93 = scmp.eq.s32.totalorder %s13, 3
      %p94 = por %p92, %p93
      %p95 = scmp.ne.s32.totalorder %s87, %s90
      %p96 = scmp.eq.s32.totalorder %s13, 0
      %p97 = por %p95, %p96
      %p98 = scmp.ne.s32.totalorder %s87, %s90
      %p99 = scmp.eq.s32.totalorder %s18, 3
      %p100 = por %p98, %p99
      %p101 = scmp.ne.s32.totalorder %s90, %s91
      %p102 = scmp.eq.s32.totalorder %s18, 0
      %p103 = por %p101, %p102
      %p104 = scmp.ne.s32.totalorder %s90, %s91
      %p105 = scmp.eq.s32.totalorder %s19, 3
      %p106 = por %p104, %p105
      %p108 = scmp.ne.s32.totalorder %s91, %s107
      %p109 = scmp.eq.s32.totalorder %s19, 0
      %p110 = por %p108, %p109
      %s111 = ssub.s32 %s20, %s32
      %p112 = scmp.eq.s32.totalorder %s111, 0
      %s114 = sadd.s32 %s113, 1
      %s115 = scalar_select %p112, %s113, %s114
      %p118 = pneg %p112
      %p119 = scmp.eq.s32.totalorder %s13, 3
      %p120 = por %p118, %p119
      %p121 = scmp.ne.s32.totalorder %s113, %s116
      %p122 = scmp.eq.s32.totalorder %s13, 0
      %p123 = por %p121, %p122
      %p124 = scmp.ne.s32.totalorder %s113, %s116
      %p125 = scmp.eq.s32.totalorder %s18, 3
      %p126 = por %p124, %p125
      %p127 = scmp.ne.s32.totalorder %s116, %s117
      %p128 = scmp.eq.s32.totalorder %s18, 0
      %p129 = por %p127, %p128
      %p130 = scmp.ne.s32.totalorder %s116, %s117
      %p131 = scmp.eq.s32.totalorder %s19, 3
      %p132 = por %p130, %p131
      %p134 = scmp.ne.s32.totalorder %s117, %s133
      %p135 = scmp.eq.s32.totalorder %s19, 0
      %p136 = por %p134, %p135
      %s137 = ssub.s32 %s20, %s32
      %p138 = scmp.eq.s32.totalorder %s137, 0
      %s140 = sadd.s32 %s139, 1
      %s141 = scalar_select %p138, %s139, %s140
      %p144 = pneg %p138
      %p145 = scmp.eq.s32.totalorder %s13, 3
      %p146 = por %p144, %p145
      %p147 = scmp.ne.s32.totalorder %s139, %s142
      %p148 = scmp.eq.s32.totalorder %s13, 0
      %p149 = por %p147, %p148
      %p150 = scmp.ne.s32.totalorder %s139, %s142
      %p151 = scmp.eq.s32.totalorder %s18, 3
      %p152 = por %p150, %p151
      %p153 = scmp.ne.s32.totalorder %s142, %s143
      %p154 = scmp.eq.s32.totalorder %s18, 0
      %p155 = por %p153, %p154
      %p156 = scmp.ne.s32.totalorder %s142, %s143
      %p157 = scmp.eq.s32.totalorder %s19, 3
      %p158 = por %p156, %p157
      %p160 = scmp.ne.s32.totalorder %s143, %s159
      %p161 = scmp.eq.s32.totalorder %s19, 0
      %p162 = por %p160, %p161
      %p163 = scmp.le.s32.totalorder 1, %s13
      %p164 = scmp.lt.s32.totalorder %s13, 5
      %p165 = pnand %p163, %p164
      %p166 = pneg %p165
      // Predicated region
      $region9: #{tpu_custom_call.1} parent=5 // pred_check
        _
      $region10: #{tpu_custom_call.1} parent=5 // pred_check_branch
        %168 = sbr.rel (%p165) target = $region12
      $region11: #{tpu_custom_call.1} parent=5 // pred_region
        %s169 = ssub.s32 %s13, 1
      $region12: #{tpu_custom_call.1} parent=5 // pred_fallthru
        _
      %p170 = scmp.lt.s32.totalorder %s13, 4
      // Predicated region
      $region13: #{tpu_custom_call.1} parent=5 // pred_check
        %p171 = pneg %p170
      $region14: #{tpu_custom_call.1} parent=5 // pred_check_branch
        %173 = sbr.rel (%p171) target = $region16
      $region15: #{tpu_custom_call.1} parent=5 // pred_region
        // Predicated region
        $region17: #{tpu_custom_call.1} parent=15 // pred_check
          %p174 = pneg %p45
        $region18: #{tpu_custom_call.1} parent=15 // pred_check_branch
          %176 = sbr.rel (%p174) target = $region20
        $region19: #{tpu_custom_call.1} parent=15 // pred_region
          %p177 = scmp.lt.s32.totalorder %s20, 1
          %s178 = scalar_select %p177, %s20, 1
          %s179 = smul.addr %s178, 8
          %s180 = scalar_lea.vmem %s0, %s179
        $region20: #{tpu_custom_call.1} parent=15 // pred_fallthru
          _
        // Predicated region
        $region21: #{tpu_custom_call.1} parent=15 // pred_check
          %p181 = pneg %p71
        $region22: #{tpu_custom_call.1} parent=15 // pred_check_branch
          %183 = sbr.rel (%p181) target = $region24
        $region23: #{tpu_custom_call.1} parent=15 // pred_region
          %s184 = sand.u32 %s61, 1
          %s185 = scalar_lea.sflag [#allocation6], %s184
          %s186 = sand.u32 %s61, 1
          %s187 = smul.addr %s186, 128
          %s188 = scalar_lea.vmem [#allocation5], %s187
          %s189 = smul.u32 16, %s21
          %s191 = ssub.s32 2048, 2048
          %192 = vsyncadd %s185, %s191
          %s193 = smul.addr %s189, 128
          %s194 = scalar_lea.hbm %s1, %s193
          %s195 = sshll.u32 %s188, 4
          %s196 = int_to_ptr.vmem [resolvable:$true] %s195
          %201 = dma.hbm_to_vmem [thread:$0]  %s194, 2048, %s196, %s185, 128, 128, 8
        $region24: #{tpu_custom_call.1} parent=15 // pred_fallthru
          _
        // Predicated region
        $region25: #{tpu_custom_call.1} parent=15 // pred_check
          %p202 = pneg %p97
        $region26: #{tpu_custom_call.1} parent=15 // pred_check_branch
          %204 = sbr.rel (%p202) target = $region28
        $region27: #{tpu_custom_call.1} parent=15 // pred_region
          %p205 = scmp.lt.s32.totalorder %s21, 1
          %s206 = scalar_select %p205, %s21, 1
          %s207 = scalar_lea.vmem %s2, %s206
        $region28: #{tpu_custom_call.1} parent=15 // pred_fallthru
          _
        // Predicated region
        $region29: #{tpu_custom_call.1} parent=15 // pred_check
          %p208 = pneg %p123
        $region30: #{tpu_custom_call.1} parent=15 // pred_check_branch
          %210 = sbr.rel (%p208) target = $region32
        $region31: #{tpu_custom_call.1} parent=15 // pred_region
          %p211 = scmp.lt.s32.totalorder %s20, 1
          %s212 = scalar_select %p211, %s20, 1
          %s213 = smul.addr %s212, 8
          %s214 = scalar_lea.vmem %s3, %s213
        $region32: #{tpu_custom_call.1} parent=15 // pred_fallthru
          _
      $region16: #{tpu_custom_call.1} parent=5 // pred_fallthru
        _
      %p215 = scmp.le.s32.totalorder 1, %s13
      %p216 = scmp.lt.s32.totalorder %s13, 5
      %p217 = pnand %p215, %p216
      %p218 = pneg %p217
      // Predicated region
      $region33: #{tpu_custom_call.1} parent=5 // pred_check
        _
      $region34: #{tpu_custom_call.1} parent=5 // pred_check_branch
        %220 = sbr.rel (%p217) target = $region36
      $region35: #{tpu_custom_call.1} parent=5 // pred_region
        %s221 = ssub.s32 %s13, 1
        %s222 = sand.u32 %s64, 1
        %s223 = scalar_lea.sflag [#allocation6], %s222
        %s224 = sand.u32 %s64, 1
        %s225 = smul.addr %s224, 128
        %s226 = scalar_lea.vmem [#allocation5], %s225
        // Predicated region
        $region37: #{tpu_custom_call.1} parent=35 // pred_check
          %p227 = pneg %p77
        $region38: #{tpu_custom_call.1} parent=35 // pred_check_branch
          %229 = sbr.rel (%p227) target = $region40
        $region39: #{tpu_custom_call.1} parent=35 // pred_region
          %230 = dma.done %s223, 2048
        $region40: #{tpu_custom_call.1} parent=35 // pred_fallthru
          _
        %p231 = scmp.lt.s32.totalorder %s22, 1
        %s232 = scalar_select %p231, %s22, 1
        %s233 = smul.addr %s232, 8
        %s234 = scalar_lea.vmem %s0, %s233
        %p235 = pneg %p51
        %p236 = pneg %p48
        %s237 = sand.u32 %s64, 1
        %s238 = scalar_lea.sflag [#allocation6], %s237
        %s239 = sand.u32 %s64, 1
        %s240 = smul.addr %s239, 128
        %s241 = scalar_lea.vmem [#allocation5], %s240
        %p242 = pneg %p77
        %p243 = pneg %p74
        %p244 = scmp.lt.s32.totalorder %s23, 1
        %s245 = scalar_select %p244, %s23, 1
        %s246 = scalar_lea.vmem %s2, %s245
        %p247 = pneg %p103
        %p248 = pneg %p100
        %p249 = scmp.lt.s32.totalorder %s22, 1
        %s250 = scalar_select %p249, %s22, 1
        %s251 = smul.addr %s250, 8
        %s252 = scalar_lea.vmem %s3, %s251
        %p253 = pneg %p129
        %p254 = pneg %p126
        %p255 = pneg %p155
        %p256 = pneg %p152
        %p257 = scmp.lt.s32.totalorder %s22, 1
        %s258 = scalar_select %p257, %s22, 1
        %s259 = smul.addr %s258, 8
        %s260 = scalar_lea.vmem %s4, %s259
        %p261 = scmp.lt.s32.totalorder %s22, 1
        %s262 = scalar_select %p261, %s22, 1
        %s263 = smul.addr %s262, 8
        %s264 = scalar_lea.vmem %s0, %s263
        %s265 = smul.u32 16, %s23
        %p266 = scmp.lt.s32.totalorder %s23, 1
        %s267 = scalar_select %p266, %s23, 1
        %s268 = scalar_lea.vmem %s2, %s267
        %p269 = scmp.lt.s32.totalorder %s22, 1
        %s270 = scalar_select %p269, %s22, 1
        %s271 = smul.addr %s270, 8
        %s272 = scalar_lea.vmem %s3, %s271
        %p273 = scmp.lt.s32.totalorder %s22, 1
        %s274 = scalar_select %p273, %s22, 1
        %s275 = smul.addr %s274, 8
        %s276 = scalar_lea.vmem %s4, %s275
        %p278 = scmp.eq.s32.totalorder %s23, 0
        // Predicated region
        $region41: #{tpu_custom_call.1} parent=35 // pred_check
          %p279 = pneg %p278
        $region42: #{tpu_custom_call.1} parent=35 // pred_check_branch
          %281 = sbr.rel (%p279) target = $region44
        $region43: #{tpu_custom_call.1} parent=35 // pred_region
          %vm282 = vcmask 7168
          %283 = vst.msk [vmem:[#allocation2] sm:$0xff] %vm282, -inf
          %284 = vst.msk [vmem:[#allocation3] sm:$0xff] %vm282, 0.0
          %285 = vst.msk [vmem:[#allocation4] sm:$0xff] %vm282, 0.0
        $region44: #{tpu_custom_call.1} parent=35 // pred_fallthru
          _
        %v286 = vld [vmem:[%s264] sm:$0xff]
        %v287 = vpack.c.bf16 %v286, %v286
        %v288 = vld [vmem:[%s226] sm:$0xff]
        %v289 = vld [vmem:[%s226 + $0x8] sm:$0xff]
        %v290 = vld [vmem:[%s226 + $0x10] sm:$0xff]
        %v291 = vld [vmem:[%s226 + $0x18] sm:$0xff]
        %v292 = vld [vmem:[%s226 + $0x20] sm:$0xff]
        %v293 = vld [vmem:[%s226 + $0x28] sm:$0xff]
        %v294 = vld [vmem:[%s226 + $0x30] sm:$0xff]
        %v295 = vld [vmem:[%s226 + $0x38] sm:$0xff]
        %v296 = vld [vmem:[%s226 + $0x40] sm:$0xff]
        %v297 = vld [vmem:[%s226 + $0x48] sm:$0xff]
        %v298 = vld [vmem:[%s226 + $0x50] sm:$0xff]
        %v299 = vld [vmem:[%s226 + $0x58] sm:$0xff]
        %v300 = vld [vmem:[%s226 + $0x60] sm:$0xff]
        %v301 = vld [vmem:[%s226 + $0x68] sm:$0xff]
        %v302 = vld [vmem:[%s226 + $0x70] sm:$0xff]
        %v303 = vld [vmem:[%s226 + $0x78] sm:$0xff]
        %v304 = vpack.c.bf16 %v289, %v288
        %v305 = vpack.c.bf16 %v291, %v290
        %v306 = vpack.c.bf16 %v293, %v292
        %v307 = vpack.c.bf16 %v295, %v294
        %v308 = vpack.c.bf16 %v297, %v296
        %v309 = vpack.c.bf16 %v299, %v298
        %v310 = vpack.c.bf16 %v301, %v300
        %v311 = vpack.c.bf16 %v303, %v302
        %v312 = vld [vmem:[%s268] sm:$0x1]
        %v314 = vlaneseq
        %v315 = vshrl.u32 %v314, 7
        %v316 = vsub.s32 0, %v315
        %v317 = vrot.slane %v312, %v316
        %319 = vmatprep.subr.bf16.mxu0 0
        %320 = vmatpush1.bf16.xpose.msra.mxu0 %v304
        %321 = vmatprep.subr.bf16.mxu0 0
        %322 = vmatpush1.bf16.xpose.msra.mxu0 %v305
        %323 = vmatprep.subr.bf16.mxu0 0
        %324 = vmatpush1.bf16.xpose.msra.mxu0 %v306
        %325 = vmatprep.subr.bf16.mxu0 0
        %326 = vmatpush1.bf16.xpose.msra.mxu0 %v307
        %327 = vmatprep.subr.bf16.mxu0 0
        %328 = vmatpush1.bf16.xpose.msra.mxu0 %v308
        %329 = vmatprep.subr.bf16.mxu0 0
        %330 = vmatpush1.bf16.xpose.msra.mxu0 %v309
        %331 = vmatprep.subr.bf16.mxu0 0
        %332 = vmatpush1.bf16.xpose.msra.mxu0 %v310
        %333 = vmatprep.subr.bf16.mxu0 0
        %334 = vmatpush1.bf16.xpose.msra.mxu0 %v311
        %335 = vmatprep.subr.bf16.mxu0 0
        %336 = vmatpush1.bf16.xpose.msra.mxu0 0
        %337 = vmatprep.subr.bf16.mxu0 0
        %338 = vmatpush1.bf16.xpose.msra.mxu0 0
        %339 = vmatprep.subr.bf16.mxu0 0
        %340 = vmatpush1.bf16.xpose.msra.mxu0 0
        %341 = vmatprep.subr.bf16.mxu0 0
        %342 = vmatpush1.bf16.xpose.msra.mxu0 0
        %343 = vmatprep.subr.bf16.mxu0 0
        %344 = vmatpush1.bf16.xpose.msra.mxu0 0
        %345 = vmatprep.subr.bf16.mxu0 0
        %346 = vmatpush1.bf16.xpose.msra.mxu0 0
        %347 = vmatprep.subr.bf16.mxu0 0
        %348 = vmatpush1.bf16.xpose.msra.mxu0 0
        %349 = vmatprep.subr.bf16.mxu0 0
        %350 = vmatpush1.bf16.xpose.msra.mxu0 0
        %351 = vmatprep.mubr.bf16.mxu0 0
        %352 = vmatmul.mubr.bf16.gmra.mrb[0].mxu0 %v287
        %v353 = vpop.f32.mrb[0].mxu0
        %v354 = vadd.f32 %v317, %v353
        %v355 = vpop.f32.mrb[0].mxu0
        %v356 = vpop.f32.mrb[0].mxu0
        %v357 = vpop.f32.mrb[0].mxu0
        %358 = vdwg.mxu0
        %v359 = vlaneseq
        %v360 = vand.u32 %v359, 127
        %s361 = smul.u32 %s23, 128
        %v362 = vstv %s361
        %v363 = vadd.s32 %v360, %v362
        %v364 = vld [vmem:[%s272] sm:$0xff]
        %365 = vset.pattern.permute.xlu0 0
        %366 = vperm.xlu0 %365, %v364
        %v367 = vpop.permute.xlu0 %366
        %vm368 = vcmp.eq.s32.totalorder %v363, %v367
        %v369 = vld [vmem:[#allocation4] sm:$0xff]
        %v370 = vsel %vm368, %v354, 0.0
        %371 = vadd.xlane.f32.xlu0 %v370
        %v372 = vpop.xlane.xlu0 %371
        %v373 = vadd.f32 %v369, %v372
        %vm374 = vcmask 7168
        %375 = vst.msk [vmem:[#allocation4] sm:$0xff] %vm374, %v373
        %v376 = vld [vmem:[#allocation2] sm:$0xff]
        %377 = vmax.xlane.f32.xlu0 %v354
        %v378 = vpop.xlane.xlu0 %377
        %v379 = vmax.f32 %v376, %v378
        %381 = vset.pattern.permute.xlu0 0
        %382 = vperm.xlu0 %381, %v379
        %v383 = vpop.permute.xlu0 %382
        %v385 = vsub.f32 %v354, %v383
        %v386 = vmul.f32 %v385, 1.442695
        %v387 = vpow.pop %v386
        %v388 = vld [vmem:[#allocation3] sm:$0xff]
        %v389 = vsub.f32 %v376, %v379
        %v390 = vmul.f32 %v389, 1.442695
        %v391 = vpow.pop %v390
        %v392 = vmul.f32 %v388, %v391
        %393 = vadd.xlane.f32.xlu0 %v387
        %v394 = vpop.xlane.xlu0 %393
        %v395 = vadd.f32 %v392, %v394
        %396 = vst.msk [vmem:[#allocation3] sm:$0xff] %vm374, %v395
        %397 = vst.msk [vmem:[#allocation2] sm:$0xff] %vm374, %v379
        %p398 = scmp.eq.s32.totalorder %s23, 1
        // Predicated region
        $region45: #{tpu_custom_call.1} parent=35 // pred_check
          %p399 = pneg %p398
        $region46: #{tpu_custom_call.1} parent=35 // pred_check_branch
          %401 = sbr.rel (%p399) target = $region48
        $region47: #{tpu_custom_call.1} parent=35 // pred_region
          %v402 = vld [vmem:[#allocation2] sm:$0xff]
          %v403 = vld [vmem:[#allocation3] sm:$0xff]
          %v404 = vlog2.pop %v403
          %v405 = vmul.f32 %v404, 0.6931472
          %v406 = vadd.f32 %v402, %v405
          %v407 = vld [vmem:[#allocation4] sm:$0xff]
          %v408 = vsub.f32 %v406, %v407
          %409 = vst.msk [vmem:[%s276] sm:$0xff] %vm374, %v408
        $region48: #{tpu_custom_call.1} parent=35 // pred_fallthru
          _
        %p410 = scmp.lt.s32.totalorder %s22, 1
        %s411 = scalar_select %p410, %s22, 1
        %s412 = smul.addr %s411, 8
        %s413 = scalar_lea.vmem %s4, %s412
        // Predicated region
        $region49: #{tpu_custom_call.1} parent=35 // pred_check
          %p414 = pneg %p152
        $region50: #{tpu_custom_call.1} parent=35 // pred_check_branch
          %416 = sbr.rel (%p414) target = $region52
        $region51: #{tpu_custom_call.1} parent=35 // pred_region
          _
        $region52: #{tpu_custom_call.1} parent=35 // pred_fallthru
          _
      $region36: #{tpu_custom_call.1} parent=5 // pred_fallthru
        _
      %p417 = scmp.le.s32.totalorder 2, %s13
      // Predicated region
      $region53: #{tpu_custom_call.1} parent=5 // pred_check
        %p418 = pneg %p417
      $region54: #{tpu_custom_call.1} parent=5 // pred_check_branch
        %420 = sbr.rel (%p418) target = $region56
      $region55: #{tpu_custom_call.1} parent=5 // pred_region
        %s421 = ssub.s32 %s13, 2
        // Predicated region
        $region57: #{tpu_custom_call.1} parent=55 // pred_check
          %p422 = pneg %p158
        $region58: #{tpu_custom_call.1} parent=55 // pred_check_branch
          %424 = sbr.rel (%p422) target = $region60
        $region59: #{tpu_custom_call.1} parent=55 // pred_region
          %p425 = scmp.lt.s32.totalorder %s24, 1
          %s426 = scalar_select %p425, %s24, 1
          %s427 = smul.addr %s426, 8
          %s428 = scalar_lea.vmem %s4, %s427
        $region60: #{tpu_custom_call.1} parent=55 // pred_fallthru
          _
      $region56: #{tpu_custom_call.1} parent=5 // pred_fallthru
        _
    $region6: #{tpu_custom_call.1} parent=1 // loop_footer
      %s17 = sadd.s32 1, %s13
    $region7: #{tpu_custom_call.1} parent=1 // loop_footer_branch
      %12 = sbr.rel target = $region3
    $region8: #{tpu_custom_call.1} parent=1 // loop_exit
      _
    %429 = vsyncpa [#allocation6], 1
    %s430 = scalar_lea.sflag [#allocation6], 1
    %431 = vsyncpa %s430, 1

</llo_original>
